<compile_context>
chip_gen: v5e
topology: v5e:2x2
jax: 0.10.0
libtpu: 0.0.40
codegen_flags: <defaults>
</compile_context>

<pallas_src>
import jax
import jax.numpy as jnp
from jax.experimental import pallas as pl
from jax.experimental.pallas import tpu as pltpu

FEAT = 4                    # in/out features of every Linear layer
GROUPS = 128 // FEAT        # 32 samples packed per 128-lane row
MAX_TILE_ROWS = 4096        # rows per grid step: 4096 x 128 x 4B = 2 MiB/block


def _fused_affine_kernel(x_ref, w_ref, b_ref, o_ref):
    """One (tile_rows, 128) tile: y = x @ kron(I, W_eff) + tile(b_eff)."""
    y = jnp.dot(x_ref[...], w_ref[...], preferred_element_type=jnp.float32)
    o_ref[...] = (y + b_ref[...]).astype(o_ref.dtype)


def mlp_chain(x, params, *, max_tile_rows=MAX_TILE_ROWS):
    """x: (B, 4) float32.  params: list of 4 (W, b), W (4,4) = torch_weight.T,
    b (1,4).  Returns (B, 4) = l3(l2(l1(l0(x))))."""
    B, F = x.shape
    assert F == FEAT

    # ---- collapse the 4 affine layers into one (tiny, done once in JAX) ----
    w_eff = params[0][0]
    b_eff = params[0][1].reshape(1, FEAT)
    for (w, b) in params[1:]:
        w_eff = w_eff @ w
        b_eff = b_eff @ w + b.reshape(1, FEAT)

    # ---- expand to a 128-lane block-diagonal weight (built once, 64 KiB) ----
    w_big = jnp.kron(jnp.eye(GROUPS, dtype=w_eff.dtype), w_eff)   # (128, 128)
    b_big = jnp.tile(b_eff, (1, GROUPS))                          # (1, 128)

    # ---- transpose-free lane-dense view of the activations ----
    # Pad batch only to the next multiple of 32 rows (minimal, <= 31 rows).
    b_pad = pl.cdiv(B, GROUPS) * GROUPS
    x_p = x if b_pad == B else jnp.pad(x, ((0, b_pad - B), (0, 0)))
    rows = b_pad // GROUPS
    x_view = x_p.reshape(rows, 128)                               # free reshape

    # Tile rows: full extent if small, else a multiple-of-8 tile <= max.
    if rows <= max_tile_rows:
        tile_rows = rows                      # full extent (always legal)
    else:
        tile_rows = (max_tile_rows // 8) * 8  # (8, 128)-aligned block
    grid = (pl.cdiv(rows, tile_rows),)

    out_view = pl.pallas_call(
        _fused_affine_kernel,
        out_shape=jax.ShapeDtypeStruct((rows, 128), x.dtype),
        grid_spec=pl.GridSpec(
            grid=grid,
            in_specs=[
                pl.BlockSpec((tile_rows, 128), lambda i: (i, 0)),  # x tile
                pl.BlockSpec((128, 128), lambda i: (0, 0)),        # kron weight
                pl.BlockSpec((1, 128), lambda i: (0, 0)),          # tiled bias
            ],
            out_specs=pl.BlockSpec((tile_rows, 128), lambda i: (i, 0)),
        ),
        compiler_params=pltpu.CompilerParams(
            dimension_semantics=("parallel",)),   # megacore-shardable (v7x)
    )(x_view, w_big, b_big)

    out = out_view.reshape(b_pad, FEAT)           # free reshape back
    return out if b_pad == B else out[:B]


def init_linear_params(key, in_f, out_f):
    """Deterministic init mimicking torch.nn.Linear (uniform +-1/sqrt(in))."""
    kw, kb = jax.random.split(key)
    bound = 1.0 / jnp.sqrt(jnp.float32(in_f))
    # W stored as (in, out) == torch_weight.T
    w = jax.random.uniform(kw, (in_f, out_f), jnp.float32, -bound, bound)
    b = jax.random.uniform(kb, (1, out_f), jnp.float32, -bound, bound)
    return w, b


def reference_forward(x, params):
    y = x
    for (w, b) in params:
        y = y @ w + b
    return y


if __name__ == "__main__":
    key = jax.random.PRNGKey(0)
    k_x, k_x2, k0, k1, k2, k3 = jax.random.split(key, 6)

    params = [
        init_linear_params(k0, FEAT, FEAT),  # l0
        init_linear_params(k1, FEAT, FEAT),  # l1
        init_linear_params(k2, FEAT, FEAT),  # l2
        init_linear_params(k3, FEAT, FEAT),  # l3
    ]

    # Small primary shape consistent with the module's Linear(4, 4) layers.
    B = 16
    x = jax.random.normal(k_x, (B, FEAT), jnp.float32)
    out = jax.block_until_ready(mlp_chain(x, params))
    ref = reference_forward(x, params)
    assert out.shape == (B, FEAT)
    assert jnp.allclose(out, ref, atol=1e-5, rtol=1e-5), "mismatch vs reference"

    # Secondary check: batch not a multiple of 32 (exercises minimal padding).
    B2 = 300
    x2 = jax.random.normal(k_x2, (B2, FEAT), jnp.float32)
    out2 = jax.block_until_ready(mlp_chain(x2, params))
    ref2 = reference_forward(x2, params)
    assert out2.shape == (B2, FEAT)
    assert jnp.allclose(out2, ref2, atol=1e-5, rtol=1e-5), "mismatch vs reference (B=300)"

    print("KERNEL_OK")
</pallas_src>

<mosaic_0001>
module attributes {stable_mosaic.version = 11 : i64} {
  func.func @_fused_affine_kernel(%arg0: i32, %arg1: memref<1x128xf32, #tpu.memory_space<vmem>>, %arg2: memref<128x128xf32, #tpu.memory_space<vmem>>, %arg3: memref<1x128xf32, #tpu.memory_space<vmem>>, %arg4: memref<1x128xf32, #tpu.memory_space<vmem>>) attributes {dimension_semantics = [#tpu.dimension_semantics<parallel>], iteration_bounds = array<i64: 1>, scalar_prefetch = 0 : i64, scratch_operands = 0 : i64, tpu.core_type = #tpu.core_type<tc>, window_params = [{transform_indices = @transform_0, window_bounds = array<i64: 1, 128>}, {pipeline_mode = #tpu.pipeline_mode<synchronous>, transform_indices = @transform_1, window_bounds = array<i64: 128, 128>}, {pipeline_mode = #tpu.pipeline_mode<synchronous>, transform_indices = @transform_2, window_bounds = array<i64: 1, 128>}, {transform_indices = @transform_3, window_bounds = array<i64: 1, 128>}]} {
    %c0 = arith.constant 0 : index
    %c0_0 = arith.constant 0 : index
    %0 = vector.load %arg1[%c0, %c0_0] : memref<1x128xf32, #tpu.memory_space<vmem>>, vector<1x128xf32>
    %c0_1 = arith.constant 0 : index
    %c0_2 = arith.constant 0 : index
    %1 = vector.load %arg2[%c0_1, %c0_2] : memref<128x128xf32, #tpu.memory_space<vmem>>, vector<128x128xf32>
    %cst = arith.constant dense<0.000000e+00> : vector<1x128xf32>
    %2 = tpu.matmul %0, %1, %cst {dimension_numbers = #tpu.dot_dimension_numbers<[1], [0], [0], [1], [0, 0, 1, 1], [], []>} : vector<1x128xf32>, vector<128x128xf32>, vector<1x128xf32> -> vector<1x128xf32>
    %c0_3 = arith.constant 0 : index
    %c0_4 = arith.constant 0 : index
    %3 = vector.load %arg3[%c0_3, %c0_4] : memref<1x128xf32, #tpu.memory_space<vmem>>, vector<1x128xf32>
    %4 = arith.addf %2, %3 : vector<1x128xf32>
    %c0_5 = arith.constant 0 : index
    %c0_6 = arith.constant 0 : index
    %5 = vector.load %arg4[%c0_5, %c0_6] : memref<1x128xf32, #tpu.memory_space<vmem>>, vector<1x128xf32>
    tpu.vector_store %arg4[%c0_5, %c0_6], %4 {strides = array<i32>} : memref<1x128xf32, #tpu.memory_space<vmem>>, vector<1x128xf32>,
    return
  }
  func.func @transform_0(%arg0: i32) -> (i32, i32) {
    %c0_i32 = arith.constant 0 : i32
    %c0_i32_0 = arith.constant 0 : i32
    return %arg0, %c0_i32 : i32, i32
  }
  func.func @transform_1(%arg0: i32) -> (i32, i32) {
    %c0_i32 = arith.constant 0 : i32
    %c0_i32_0 = arith.constant 0 : i32
    %c0_i32_1 = arith.constant 0 : i32
    return %c0_i32, %c0_i32_0 : i32, i32
  }
  func.func @transform_2(%arg0: i32) -> (i32, i32) {
    %c0_i32 = arith.constant 0 : i32
    %c0_i32_0 = arith.constant 0 : i32
    %c0_i32_1 = arith.constant 0 : i32
    return %c0_i32, %c0_i32_0 : i32, i32
  }
  func.func @transform_3(%arg0: i32) -> (i32, i32) {
    %c0_i32 = arith.constant 0 : i32
    %c0_i32_0 = arith.constant 0 : i32
    return %arg0, %c0_i32 : i32, i32
  }
}

</mosaic_0001>

<llo_original>
// kernel: tpu_custom_call.1
$region0: #{tpu_custom_call.1}
  #allocation0 [shape = 'u32[]', space=smem, size = 0x4, offset = 0x4, fixed_abs, tag = 'smem constant byte address 0x4 - core index']
  #allocation1 [shape = 'u32[72,128]{1,0:T(1,128)}', space=vmem, size = 0x9000, scoped, tag = 'internal scratch']
  %s0 = inlined_call_operand.hbm [shape: f32[1,128], index: 0, kind: input, shape index: {}]
  %s1 = inlined_call_operand.hbm [shape: f32[128,128], index: 1, kind: input, shape index: {}]
  %s2 = inlined_call_operand.vmem [shape: f32[1,128], index: 2, kind: input, shape index: {}]
  %s3 = inlined_call_operand.hbm [shape: f32[1,128], index: 3, kind: output, shape index: {}]
  %s4 = sld [smem:[#allocation0]]
  $region30: #{tpu_custom_call.1} parent=0
    _
  %s6 = ssub.s32 1, %s4
  %s7 = scalar_select 0, %s6, %s4
  $region1: #{tpu_custom_call.1} parent=0
    #allocation2 [shape = 'u8[512]{0}', space=vmem, size = 0x400, scoped, tag = 'input window, operand 0, single buffered']
    #allocation3 [shape = 's32[1]{0}', space=sflag, size = 0x4, scoped, tag = 'scoped memory for tpu_custom_call.1']
    #allocation4 [shape = 's32[1]{0}', space=sflag, size = 0x4, scoped, tag = 'scoped memory for tpu_custom_call.1']
    #allocation5 [shape = 'u8[65536]{0}', space=vmem, size = 0x10000, scoped, tag = 'input window, operand 1, single buffered']
    #allocation6 [shape = 's32[1]{0}', space=sflag, size = 0x4, scoped, tag = 'scoped memory for tpu_custom_call.1']
    #allocation7 [shape = 'u8[512]{0}', space=vmem, size = 0x400, scoped, tag = 'output window, operand 0, single buffered']
    %8 = vsyncpa [#allocation3], 0
    %9 = vsyncpa [#allocation6], 0
    %10 = vsyncpa [#allocation4], 0
    // Predicated region
    $region2: #{tpu_custom_call.1} parent=1 // pred_check
      _
    $region3: #{tpu_custom_call.1} parent=1 // pred_check_branch
      %12 = sbr.rel (0) target = $region5
    $region4: #{tpu_custom_call.1} parent=1 // pred_region
      %14 = vsyncadd [#allocation3], 0
      %s16 = sshll.u32 %s0, 4
      %s17 = int_to_ptr.hbm [resolvable:$true] %s16
      %s18 = sshll.u32 [#allocation2], 4
      %s19 = int_to_ptr.vmem [resolvable:$true] %s18
      %21 = dma.hbm_to_vmem [thread:$0]  %s17, 16, %s19, [#allocation3]
    $region5: #{tpu_custom_call.1} parent=1 // pred_fallthru
      _
    // Predicated region
    $region6: #{tpu_custom_call.1} parent=1 // pred_check
      _
    $region7: #{tpu_custom_call.1} parent=1 // pred_check_branch
      %23 = sbr.rel (0) target = $region9
    $region8: #{tpu_custom_call.1} parent=1 // pred_region
      %25 = vsyncadd [#allocation6], 0
      %s26 = sshll.u32 %s1, 4
      %s27 = int_to_ptr.hbm [resolvable:$true] %s26
      %s28 = sshll.u32 [#allocation5], 4
      %s29 = int_to_ptr.vmem [resolvable:$true] %s28
      %34 = dma.hbm_to_vmem [thread:$0]  %s27, 2048, %s29, [#allocation6], 128, 128, 8
    $region9: #{tpu_custom_call.1} parent=1 // pred_fallthru
      _
    // Predicated region
    $region10: #{tpu_custom_call.1} parent=1 // pred_check
      _
    $region11: #{tpu_custom_call.1} parent=1 // pred_check_branch
      %36 = sbr.rel (0) target = $region13
    $region12: #{tpu_custom_call.1} parent=1 // pred_region
      _
    $region13: #{tpu_custom_call.1} parent=1 // pred_fallthru
      _
    // Predicated region
    $region14: #{tpu_custom_call.1} parent=1 // pred_check
      _
    $region15: #{tpu_custom_call.1} parent=1 // pred_check_branch
      %38 = sbr.rel (0) target = $region17
    $region16: #{tpu_custom_call.1} parent=1 // pred_region
      %40 = dma.done [#allocation3], 16
    $region17: #{tpu_custom_call.1} parent=1 // pred_fallthru
      _
    // Predicated region
    $region18: #{tpu_custom_call.1} parent=1 // pred_check
      _
    $region19: #{tpu_custom_call.1} parent=1 // pred_check_branch
      %42 = sbr.rel (0) target = $region21
    $region20: #{tpu_custom_call.1} parent=1 // pred_region
      %44 = dma.done [#allocation6], 2048
    $region21: #{tpu_custom_call.1} parent=1 // pred_fallthru
      _
    %v45 = vld [vmem:[#allocation2] sm:$0x1]
    %v46 = vld [vmem:[#allocation5] sm:$0xff]
    %v47 = vld [vmem:[#allocation5 + $0x8] sm:$0xff]
    %v48 = vld [vmem:[#allocation5 + $0x10] sm:$0xff]
    %v49 = vld [vmem:[#allocation5 + $0x18] sm:$0xff]
    %v50 = vld [vmem:[#allocation5 + $0x20] sm:$0xff]
    %v51 = vld [vmem:[#allocation5 + $0x28] sm:$0xff]
    %v52 = vld [vmem:[#allocation5 + $0x30] sm:$0xff]
    %v53 = vld [vmem:[#allocation5 + $0x38] sm:$0xff]
    %v54 = vld [vmem:[#allocation5 + $0x40] sm:$0xff]
    %v55 = vld [vmem:[#allocation5 + $0x48] sm:$0xff]
    %v56 = vld [vmem:[#allocation5 + $0x50] sm:$0xff]
    %v57 = vld [vmem:[#allocation5 + $0x58] sm:$0xff]
    %v58 = vld [vmem:[#allocation5 + $0x60] sm:$0xff]
    %v59 = vld [vmem:[#allocation5 + $0x68] sm:$0xff]
    %v60 = vld [vmem:[#allocation5 + $0x70] sm:$0xff]
    %v61 = vld [vmem:[#allocation5 + $0x78] sm:$0xff]
    %v62 = vld [vmem:[%s2] sm:$0x1]
    %63 = vmatpush.msra.mxu0 %v61
    %64 = vmatpush.msra.mxu0 %v60
    %65 = vmatpush.msra.mxu0 %v59
    %66 = vmatpush.msra.mxu0 %v58
    %67 = vmatpush.msra.mxu0 %v57
    %68 = vmatpush.msra.mxu0 %v56
    %69 = vmatpush.msra.mxu0 %v55
    %70 = vmatpush.msra.mxu0 %v54
    %71 = vmatpush.msra.mxu0 %v53
    %72 = vmatpush.msra.mxu0 %v52
    %73 = vmatpush.msra.mxu0 %v51
    %74 = vmatpush.msra.mxu0 %v50
    %75 = vmatpush.msra.mxu0 %v49
    %76 = vmatpush.msra.mxu0 %v48
    %77 = vmatpush.msra.mxu0 %v47
    %78 = vmatpush.msra.mxu0 %v46
    %79 = vmatmul.f32.gmra.mxu0 %v45
    %v80 = vpop.f32.mrf.mxu0
    %v81 = vadd.f32 %v62, %v80
    %82 = vdwg.mxu0
    %83 = vst [vmem:[#allocation7] sm:$0x1] %v81
    // Predicated region
    $region22: #{tpu_custom_call.1} parent=1 // pred_check
      _
    $region23: #{tpu_custom_call.1} parent=1 // pred_check_branch
      %85 = sbr.rel (0) target = $region25
    $region24: #{tpu_custom_call.1} parent=1 // pred_region
      %87 = vsyncadd [#allocation4], 0
      %s89 = sshll.u32 [#allocation7], 4
      %s90 = int_to_ptr.vmem [resolvable:$true] %s89
      %s91 = sshll.u32 %s3, 4
      %s92 = int_to_ptr.hbm [resolvable:$true] %s91
      %94 = dma.vmem_to_hbm [thread:$0]  %s90, 16, %s92, [#allocation4]
    $region25: #{tpu_custom_call.1} parent=1 // pred_fallthru
      _
    // Predicated region
    $region26: #{tpu_custom_call.1} parent=1 // pred_check
      _
    $region27: #{tpu_custom_call.1} parent=1 // pred_check_branch
      %96 = sbr.rel (0) target = $region29
    $region28: #{tpu_custom_call.1} parent=1 // pred_region
      %98 = dma.done [#allocation4], 16
    $region29: #{tpu_custom_call.1} parent=1 // pred_fallthru
      _
    %99 = vsyncpa [#allocation3], 1
    %100 = vsyncpa [#allocation6], 1
    %101 = vsyncpa [#allocation4], 1

</llo_original>
